<compile_context>
chip_gen: v7x
topology: tpu7x:2x2x1
jax: 0.10.0
libtpu: 0.0.40
codegen_flags: <defaults>
</compile_context>

<pallas_src>
import jax
import jax.numpy as jnp
from jax.experimental import pallas as pl
from jax.experimental.pallas import tpu as pltpu

_SUBLANE = 16                       # lcm of f32 (8) and bf16 (16) sublane tiling
_LANE = 128
_VMEM_BUDGET = 20 * 1024 * 1024     # per-tile working-set target (fits v7x 32 MiB scoped default)


def _round_up(n: int, m: int) -> int:
    return ((n + m - 1) // m) * m


def _estimate_vmem_bytes(tb: int, input_dim: int, ep: int, c: int, e: int) -> int:
    """Rough double-buffered VMEM footprint for one grid step."""
    x_tile = tb * input_dim * 2                 # bf16 x block
    out_tiles = tb * (c + c + e) * 4            # f32 logits / probs / cemb blocks
    weights = (input_dim * ep + ep * c + c * e) * 2 + (ep + c) * 4
    return 2 * (x_tile + out_tiles + weights)   # everything pipelined/double-buffered


def _cell_type_embedding_kernel(x_ref, w1_ref, b1_ref, w2_ref, b2_ref, emb_ref,
                                logits_ref, probs_ref, cemb_ref):
    # Linear -> ReLU (Dropout is identity at inference). MXU eats bf16; accum in f32.
    h = jnp.dot(x_ref[...], w1_ref[...], preferred_element_type=jnp.float32)
    h = jnp.maximum(h + b1_ref[...], 0.0)

    # Classifier head -> logits over the exact (unpadded) C columns.
    logits = jnp.dot(h.astype(w2_ref.dtype), w2_ref[...],
                     preferred_element_type=jnp.float32) + b2_ref[...]

    # Numerically stable softmax, exact divide (approx reciprocal is off the critical
    # path here and its ~1e-3 error broke the downstream embedding check).
    m = jnp.max(logits, axis=-1, keepdims=True)
    e = jnp.exp(logits - m)
    probs = e / jnp.sum(e, axis=-1, keepdims=True)

    # Soft cell-type embedding: probs @ embedding_table.
    cemb = jnp.dot(probs.astype(emb_ref.dtype), emb_ref[...],
                   preferred_element_type=jnp.float32)

    logits_ref[...] = logits.astype(logits_ref.dtype)
    probs_ref[...] = probs.astype(probs_ref.dtype)
    cemb_ref[...] = cemb.astype(cemb_ref.dtype)


def prepare_cell_type_embedding_params(w1, b1, w2, b2, emb_table,
                                       compute_dtype=jnp.bfloat16):
    """One-time parameter preparation (hoisted out of the forward path).

    Pads the hidden dim E to a 128-lane multiple (zero cols in W1/b1, matching zero
    rows in W2) so the hidden activation is lane-dense, and casts the matmul operands
    to bf16 (MXU-native).  Biases stay f32 for the f32 VPU adds.
    """
    input_dim, E = w1.shape
    C = w2.shape[1]
    Ep = _round_up(E, _LANE)
    w1p = jnp.zeros((input_dim, Ep), compute_dtype).at[:, :E].set(w1.astype(compute_dtype))
    b1p = jnp.zeros((1, Ep), jnp.float32).at[:, :E].set(b1.reshape(1, E).astype(jnp.float32))
    w2p = jnp.zeros((Ep, C), compute_dtype).at[:E, :].set(w2.astype(compute_dtype))
    b2r = b2.reshape(1, C).astype(jnp.float32)
    embc = emb_table.astype(compute_dtype)
    return w1p, b1p, w2p, b2r, embc


def cell_type_embedding_forward(x, params, *, block_b: int = 2048):
    """Returns (logits [B,C], probs [B,C], cell_embedding [B,E]) in float32."""
    w1p, b1p, w2p, b2r, embc = params
    B, input_dim = x.shape
    Ep = w1p.shape[1]
    C = w2p.shape[1]
    E = embc.shape[1]

    # bf16 x halves the kernel's HBM read; in a fused model the producer would already
    # emit bf16 and this cast disappears.
    x = x.astype(w1p.dtype)

    # --- batch tiling --------------------------------------------------------------
    block_b = max(block_b, _SUBLANE)
    TB = min(block_b, _round_up(B, _SUBLANE))
    if B > _SUBLANE:
        # Aim for >=2 grid steps so dimension_semantics="parallel" can shard the batch
        # across v7x's 2 TensorCores.
        TB = min(TB, _round_up(pl.cdiv(B, 2), _SUBLANE))
    # Shrink until the double-buffered working set fits the (v7x-safe) VMEM budget.
    while TB > _SUBLANE and _estimate_vmem_bytes(TB, input_dim, Ep, C, E) > _VMEM_BUDGET:
        TB = _round_up(TB // 2, _SUBLANE)
    if TB >= B:
        TB = B                      # single full-dim block: no padding, no masked tail
    grid = (pl.cdiv(B, TB),)        # ragged tail (if any) -> masked OOB reads/writes,
                                    # safe because every output row depends only on its
                                    # own input row.

    est = _estimate_vmem_bytes(TB, input_dim, Ep, C, E)
    vmem_limit = int(min(64 * 1024 * 1024, max(32 * 1024 * 1024, 2 * est)))

    def resident(shape):
        # Block index never changes across the grid -> DMA'd once, stays VMEM-resident.
        return pl.BlockSpec(shape, lambda i: (0, 0))

    out_shapes = (
        jax.ShapeDtypeStruct((B, C), jnp.float32),   # logits (exact width -> no slicing)
        jax.ShapeDtypeStruct((B, C), jnp.float32),   # probs
        jax.ShapeDtypeStruct((B, E), jnp.float32),   # cell embedding
    )

    logits, probs, cemb = pl.pallas_call(
        _cell_type_embedding_kernel,
        out_shape=out_shapes,
        grid_spec=pltpu.PrefetchScalarGridSpec(
            num_scalar_prefetch=0,
            grid=grid,
            in_specs=[
                pl.BlockSpec((TB, input_dim), lambda i: (i, 0)),  # x: tiled over batch (bf16)
                resident((input_dim, Ep)),                        # W1 (bf16, E padded to 128)
                resident((1, Ep)),                                # b1 (f32)
                resident((Ep, C)),                                # W2 (bf16)
                resident((1, C)),                                 # b2 (f32)
                resident((C, E)),                                 # emb table (bf16)
            ],
            out_specs=(
                pl.BlockSpec((TB, C), lambda i: (i, 0)),
                pl.BlockSpec((TB, C), lambda i: (i, 0)),
                pl.BlockSpec((TB, E), lambda i: (i, 0)),
            ),
        ),
        compiler_params=pltpu.CompilerParams(
            dimension_semantics=("parallel",),   # batch tiles -> v7x 2-TC sharding
            vmem_limit_bytes=vmem_limit,
        ),
    )(x, w1p, b1p, w2p, b2r, embc)

    return logits, probs, cemb


if __name__ == "__main__":
    input_dim = 32
    embedding_dim = 32
    num_cell_types = 16

    key = jax.random.PRNGKey(0)
    kx, kw1, kb1, kw2, kb2, kemb = jax.random.split(key, 6)

    # Deterministic parameter init (shapes from the module __init__).
    w1 = jax.random.normal(kw1, (input_dim, embedding_dim), dtype=jnp.float32) * 0.1
    b1 = jax.random.normal(kb1, (embedding_dim,), dtype=jnp.float32) * 0.01
    w2 = jax.random.normal(kw2, (embedding_dim, num_cell_types), dtype=jnp.float32) * 0.1
    b2 = jax.random.normal(kb2, (num_cell_types,), dtype=jnp.float32) * 0.01
    emb_table = jax.random.normal(kemb, (num_cell_types, embedding_dim), dtype=jnp.float32)

    # Parameter prep runs ONCE (hoisted out of the forward path).
    params = prepare_cell_type_embedding_params(w1, b1, w2, b2, emb_table)

    # batch=10: non-multiple of 8 -> single full-dim block, grid=(1,)
    # batch=64: clean 2-way split -> grid=(2,) exercising the multi-tile / megacore path
    for batch in (10, 64):
        x = jax.random.normal(jax.random.fold_in(kx, batch), (batch, input_dim),
                              dtype=jnp.float32)

        logits, probs, cell_emb = jax.block_until_ready(
            cell_type_embedding_forward(x, params)
        )

        # Pure-JAX f32 reference (module semantics, eval mode).
        h_ref = jnp.maximum(x @ w1 + b1, 0.0)
        logits_ref = h_ref @ w2 + b2
        probs_ref = jax.nn.softmax(logits_ref, axis=-1)
        cemb_ref = probs_ref @ emb_table

        assert logits.shape == (batch, num_cell_types)
        assert probs.shape == (batch, num_cell_types)
        assert cell_emb.shape == (batch, embedding_dim)
        # bf16 MXU operands -> compare against the f32 reference with bf16-level tolerances.
        assert jnp.allclose(logits, logits_ref, atol=2e-2), "logits mismatch"
        assert jnp.allclose(probs, probs_ref, atol=1e-2), "probs mismatch"
        assert jnp.allclose(cell_emb, cemb_ref, atol=3e-2), "embedding mismatch"
        # Exact divide in the softmax -> probs are properly normalized.
        assert jnp.allclose(jnp.sum(probs, axis=-1), 1.0, atol=1e-3), "probs not normalized"

    print("KERNEL_OK")
</pallas_src>

<mosaic_0001>
module attributes {stable_mosaic.version = 11 : i64} {
  func.func @_cell_type_embedding_kernel(%arg0: i32, %arg1: memref<10x32xbf16, #tpu.memory_space<vmem>>, %arg2: memref<32x128xbf16, #tpu.memory_space<vmem>>, %arg3: memref<1x128xf32, #tpu.memory_space<vmem>>, %arg4: memref<128x16xbf16, #tpu.memory_space<vmem>>, %arg5: memref<1x16xf32, #tpu.memory_space<vmem>>, %arg6: memref<16x32xbf16, #tpu.memory_space<vmem>>, %arg7: memref<10x16xf32, #tpu.memory_space<vmem>>, %arg8: memref<10x16xf32, #tpu.memory_space<vmem>>, %arg9: memref<10x32xf32, #tpu.memory_space<vmem>>) attributes {dimension_semantics = [#tpu.dimension_semantics<parallel>], iteration_bounds = array<i64: 1>, scalar_prefetch = 0 : i64, scratch_operands = 0 : i64, tpu.core_type = #tpu.core_type<tc>, window_params = [{transform_indices = @transform_0, window_bounds = array<i64: 10, 32>}, {pipeline_mode = #tpu.pipeline_mode<synchronous>, transform_indices = @transform_1, window_bounds = array<i64: 32, 128>}, {pipeline_mode = #tpu.pipeline_mode<synchronous>, transform_indices = @transform_2, window_bounds = array<i64: 1, 128>}, {pipeline_mode = #tpu.pipeline_mode<synchronous>, transform_indices = @transform_3, window_bounds = array<i64: 128, 16>}, {pipeline_mode = #tpu.pipeline_mode<synchronous>, transform_indices = @transform_4, window_bounds = array<i64: 1, 16>}, {pipeline_mode = #tpu.pipeline_mode<synchronous>, transform_indices = @transform_5, window_bounds = array<i64: 16, 32>}, {transform_indices = @transform_6, window_bounds = array<i64: 10, 16>}, {transform_indices = @transform_7, window_bounds = array<i64: 10, 16>}, {transform_indices = @transform_8, window_bounds = array<i64: 10, 32>}]} {
    %c0 = arith.constant 0 : index
    %c0_0 = arith.constant 0 : index
    %0 = vector.load %arg1[%c0, %c0_0] : memref<10x32xbf16, #tpu.memory_space<vmem>>, vector<10x32xbf16>
    %c0_1 = arith.constant 0 : index
    %c0_2 = arith.constant 0 : index
    %1 = vector.load %arg2[%c0_1, %c0_2] : memref<32x128xbf16, #tpu.memory_space<vmem>>, vector<32x128xbf16>
    %cst = arith.constant dense<0.000000e+00> : vector<10x128xf32>
    %2 = tpu.matmul %0, %1, %cst {dimension_numbers = #tpu.dot_dimension_numbers<[1], [0], [0], [1], [0, 0, 1, 1], [], []>} : vector<10x32xbf16>, vector<32x128xbf16>, vector<10x128xf32> -> vector<10x128xf32>
    %c0_3 = arith.constant 0 : index
    %c0_4 = arith.constant 0 : index
    %3 = vector.load %arg3[%c0_3, %c0_4] : memref<1x128xf32, #tpu.memory_space<vmem>>, vector<1x128xf32>
    %4 = vector.broadcast %3 : vector<1x128xf32> to vector<10x128xf32>
    %5 = arith.addf %2, %4 : vector<10x128xf32>
    %cst_5 = arith.constant 0.000000e+00 : f32
    %6 = vector.broadcast %cst_5 : f32 to vector<10x128xf32>
    %7 = arith.maximumf %5, %6 : vector<10x128xf32>
    %8 = arith.truncf %7 : vector<10x128xf32> to vector<10x128xbf16>
    %c0_6 = arith.constant 0 : index
    %c0_7 = arith.constant 0 : index
    %9 = vector.load %arg4[%c0_6, %c0_7] : memref<128x16xbf16, #tpu.memory_space<vmem>>, vector<128x16xbf16>
    %cst_8 = arith.constant dense<0.000000e+00> : vector<10x16xf32>
    %10 = tpu.matmul %8, %9, %cst_8 {dimension_numbers = #tpu.dot_dimension_numbers<[1], [0], [0], [1], [0, 0, 1, 1], [], []>} : vector<10x128xbf16>, vector<128x16xbf16>, vector<10x16xf32> -> vector<10x16xf32>
    %c0_9 = arith.constant 0 : index
    %c0_10 = arith.constant 0 : index
    %11 = vector.load %arg5[%c0_9, %c0_10] : memref<1x16xf32, #tpu.memory_space<vmem>>, vector<1x16xf32>
    %12 = vector.broadcast %11 : vector<1x16xf32> to vector<10x16xf32>
    %13 = arith.addf %10, %12 : vector<10x16xf32>
    %cst_11 = arith.constant dense<0xFF800000> : vector<10xf32>
    %14 = vector.multi_reduction <maximumf>, %13, %cst_11 [1] : vector<10x16xf32> to vector<10xf32>
    %15 = vector.shape_cast %14 : vector<10xf32> to vector<10x1xf32>
    %16 = vector.broadcast %15 : vector<10x1xf32> to vector<10x16xf32>
    %17 = arith.subf %13, %16 : vector<10x16xf32>
    %18 = math.exp %17 : vector<10x16xf32>
    %cst_12 = arith.constant dense<0.000000e+00> : vector<10xf32>
    %19 = vector.multi_reduction <add>, %18, %cst_12 [1] : vector<10x16xf32> to vector<10xf32>
    %20 = vector.shape_cast %19 : vector<10xf32> to vector<10x1xf32>
    %21 = vector.broadcast %20 : vector<10x1xf32> to vector<10x16xf32>
    %22 = arith.divf %18, %21 : vector<10x16xf32>
    %23 = arith.truncf %22 : vector<10x16xf32> to vector<10x16xbf16>
    %c0_13 = arith.constant 0 : index
    %c0_14 = arith.constant 0 : index
    %24 = vector.load %arg6[%c0_13, %c0_14] : memref<16x32xbf16, #tpu.memory_space<vmem>>, vector<16x32xbf16>
    %cst_15 = arith.constant dense<0.000000e+00> : vector<10x32xf32>
    %25 = tpu.matmul %23, %24, %cst_15 {dimension_numbers = #tpu.dot_dimension_numbers<[1], [0], [0], [1], [0, 0, 1, 1], [], []>} : vector<10x16xbf16>, vector<16x32xbf16>, vector<10x32xf32> -> vector<10x32xf32>
    %c0_16 = arith.constant 0 : index
    %c0_17 = arith.constant 0 : index
    %26 = vector.load %arg7[%c0_16, %c0_17] : memref<10x16xf32, #tpu.memory_space<vmem>>, vector<10x16xf32>
    tpu.vector_store %arg7[%c0_16, %c0_17], %13 {strides = array<i32>} : memref<10x16xf32, #tpu.memory_space<vmem>>, vector<10x16xf32>,
    %c0_18 = arith.constant 0 : index
    %c0_19 = arith.constant 0 : index
    %27 = vector.load %arg8[%c0_18, %c0_19] : memref<10x16xf32, #tpu.memory_space<vmem>>, vector<10x16xf32>
    tpu.vector_store %arg8[%c0_18, %c0_19], %22 {strides = array<i32>} : memref<10x16xf32, #tpu.memory_space<vmem>>, vector<10x16xf32>,
    %c0_20 = arith.constant 0 : index
    %c0_21 = arith.constant 0 : index
    %28 = vector.load %arg9[%c0_20, %c0_21] : memref<10x32xf32, #tpu.memory_space<vmem>>, vector<10x32xf32>
    tpu.vector_store %arg9[%c0_20, %c0_21], %25 {strides = array<i32>} : memref<10x32xf32, #tpu.memory_space<vmem>>, vector<10x32xf32>,
    return
  }
  func.func @transform_0(%arg0: i32) -> (i32, i32) {
    %c0_i32 = arith.constant 0 : i32
    %c0_i32_0 = arith.constant 0 : i32
    return %arg0, %c0_i32 : i32, i32
  }
  func.func @transform_1(%arg0: i32) -> (i32, i32) {
    %c0_i32 = arith.constant 0 : i32
    %c0_i32_0 = arith.constant 0 : i32
    %c0_i32_1 = arith.constant 0 : i32
    return %c0_i32, %c0_i32_0 : i32, i32
  }
  func.func @transform_2(%arg0: i32) -> (i32, i32) {
    %c0_i32 = arith.constant 0 : i32
    %c0_i32_0 = arith.constant 0 : i32
    %c0_i32_1 = arith.constant 0 : i32
    return %c0_i32, %c0_i32_0 : i32, i32
  }
  func.func @transform_3(%arg0: i32) -> (i32, i32) {
    %c0_i32 = arith.constant 0 : i32
    %c0_i32_0 = arith.constant 0 : i32
    %c0_i32_1 = arith.constant 0 : i32
    return %c0_i32, %c0_i32_0 : i32, i32
  }
  func.func @transform_4(%arg0: i32) -> (i32, i32) {
    %c0_i32 = arith.constant 0 : i32
    %c0_i32_0 = arith.constant 0 : i32
    %c0_i32_1 = arith.constant 0 : i32
    return %c0_i32, %c0_i32_0 : i32, i32
  }
  func.func @transform_5(%arg0: i32) -> (i32, i32) {
    %c0_i32 = arith.constant 0 : i32
    %c0_i32_0 = arith.constant 0 : i32
    %c0_i32_1 = arith.constant 0 : i32
    return %c0_i32, %c0_i32_0 : i32, i32
  }
  func.func @transform_6(%arg0: i32) -> (i32, i32) {
    %c0_i32 = arith.constant 0 : i32
    %c0_i32_0 = arith.constant 0 : i32
    return %arg0, %c0_i32 : i32, i32
  }
  func.func @transform_7(%arg0: i32) -> (i32, i32) {
    %c0_i32 = arith.constant 0 : i32
    %c0_i32_0 = arith.constant 0 : i32
    return %arg0, %c0_i32 : i32, i32
  }
  func.func @transform_8(%arg0: i32) -> (i32, i32) {
    %c0_i32 = arith.constant 0 : i32
    %c0_i32_0 = arith.constant 0 : i32
    return %arg0, %c0_i32 : i32, i32
  }
}

</mosaic_0001>

<llo_original>
// kernel: tpu_custom_call.1
$region0: #{tpu_custom_call.1}
  #allocation0 [shape = 'u32[]', space=smem, size = 0x4, offset = 0x4, fixed_abs, tag = 'smem constant byte address 0x4 - core index']
  #allocation1 [shape = 'u32[144,128]{1,0:T(1,128)}', space=vmem, size = 0x12000, scoped, tag = 'internal scratch']
  %s0 = inlined_call_operand.vmem [shape: bf16[10,32], index: 0, kind: input, shape index: {}]
  %s1 = inlined_call_operand.vmem [shape: bf16[32,128], index: 1, kind: input, shape index: {}]
  %s2 = inlined_call_operand.vmem [shape: f32[1,128], index: 2, kind: input, shape index: {}]
  %s3 = inlined_call_operand.vmem [shape: bf16[128,16], index: 3, kind: input, shape index: {}]
  %s4 = inlined_call_operand.vmem [shape: f32[1,16], index: 4, kind: input, shape index: {}]
  %s5 = inlined_call_operand.vmem [shape: bf16[16,32], index: 5, kind: input, shape index: {}]
  %s6 = inlined_call_operand.hbm [shape: f32[10,16], index: 6, kind: output, shape index: {0}]
  %s7 = inlined_call_operand.hbm [shape: f32[10,16], index: 7, kind: output, shape index: {1}]
  %s8 = inlined_call_operand.hbm [shape: f32[10,32], index: 8, kind: output, shape index: {2}]
  %9 = xla_tuple %s6, %s7, %s8
  %s10 = sld [smem:[#allocation0]]
  $region50: #{tpu_custom_call.1} parent=0
    _
  %s12 = ssub.s32 1, %s10
  %s13 = scalar_select 0, %s12, %s10
  $region1: #{tpu_custom_call.1} parent=0
    #allocation2 [shape = 'u8[8192]{0}', space=vmem, size = 0x2000, scoped, tag = 'output window, operand 0, single buffered']
    #allocation3 [shape = 's32[1]{0}', space=sflag, size = 0x4, scoped, tag = 'scoped memory for tpu_custom_call.1']
    #allocation4 [shape = 'u8[8192]{0}', space=vmem, size = 0x2000, scoped, tag = 'output window, operand 1, single buffered']
    #allocation5 [shape = 's32[1]{0}', space=sflag, size = 0x4, scoped, tag = 'scoped memory for tpu_custom_call.1']
    #allocation6 [shape = 'u8[8192]{0}', space=vmem, size = 0x2000, scoped, tag = 'output window, operand 2, single buffered']
    %14 = vsyncpa [#allocation3], 0
    %15 = vsyncpa [#allocation5], 0
    // Predicated region
    $region2: #{tpu_custom_call.1} parent=1 // pred_check
      _
    $region3: #{tpu_custom_call.1} parent=1 // pred_check_branch
      %17 = sbr.rel (0) target = $region5
    $region4: #{tpu_custom_call.1} parent=1 // pred_region
      _
    $region5: #{tpu_custom_call.1} parent=1 // pred_fallthru
      _
    // Predicated region
    $region6: #{tpu_custom_call.1} parent=1 // pred_check
      _
    $region7: #{tpu_custom_call.1} parent=1 // pred_check_branch
      %19 = sbr.rel (0) target = $region9
    $region8: #{tpu_custom_call.1} parent=1 // pred_region
      _
    $region9: #{tpu_custom_call.1} parent=1 // pred_fallthru
      _
    // Predicated region
    $region10: #{tpu_custom_call.1} parent=1 // pred_check
      _
    $region11: #{tpu_custom_call.1} parent=1 // pred_check_branch
      %21 = sbr.rel (0) target = $region13
    $region12: #{tpu_custom_call.1} parent=1 // pred_region
      _
    $region13: #{tpu_custom_call.1} parent=1 // pred_fallthru
      _
    // Predicated region
    $region14: #{tpu_custom_call.1} parent=1 // pred_check
      _
    $region15: #{tpu_custom_call.1} parent=1 // pred_check_branch
      %23 = sbr.rel (0) target = $region17
    $region16: #{tpu_custom_call.1} parent=1 // pred_region
      _
    $region17: #{tpu_custom_call.1} parent=1 // pred_fallthru
      _
    // Predicated region
    $region18: #{tpu_custom_call.1} parent=1 // pred_check
      _
    $region19: #{tpu_custom_call.1} parent=1 // pred_check_branch
      %25 = sbr.rel (0) target = $region21
    $region20: #{tpu_custom_call.1} parent=1 // pred_region
      _
    $region21: #{tpu_custom_call.1} parent=1 // pred_fallthru
      _
    // Predicated region
    $region22: #{tpu_custom_call.1} parent=1 // pred_check
      _
    $region23: #{tpu_custom_call.1} parent=1 // pred_check_branch
      %27 = sbr.rel (0) target = $region25
    $region24: #{tpu_custom_call.1} parent=1 // pred_region
      _
    $region25: #{tpu_custom_call.1} parent=1 // pred_fallthru
      _
    %v29 = vld [vmem:[%s0] sm:$0xf]
    %v30 = vld [vmem:[%s0 + $0x4] sm:$0x1]
    %v31 = vld [vmem:[%s1] sm:$0xf]
    %v32 = vld [vmem:[%s1 + $0x4] sm:$0xf]
    %v33 = vld [vmem:[%s1 + $0x8] sm:$0xf]
    %v34 = vld [vmem:[%s1 + $0xc] sm:$0xf]
    %v35 = vld [vmem:[%s2] sm:$0x1]
    %v37 = vlaneseq
    %v38 = vshrl.u32 %v37, 7
    %v39 = vsub.s32 0, %v38
    %v40 = vrot.slane %v35, %v39
    %v44 = vunpack.c.l.b16 %v29
    %v45 = vunpack.c.l.b16 %v30
    %v46 = vpack.c.b16 %v45, %v44
    %v51 = vunpack.c.l.b16 %v31
    %v52 = vunpack.c.l.b16 %v32
    %v53 = vunpack.c.l.b16 %v33
    %v54 = vunpack.c.l.b16 %v34
    %v55 = vpack.c.b16 %v52, %v51
    %v56 = vpack.c.b16 %v54, %v53
    %vm59 = vcmask 261120
    %v61 = vsel %vm59, %v46, 0
    %63 = vmatprep.subr.bf16.mxu0 0
    %64 = vmatpush1.bf16.msra.mxu0 %v55
    %65 = vmatprep.subr.bf16.mxu0 0
    %66 = vmatpush1.bf16.msra.mxu0 %v56
    %67 = vmatprep.subr.bf16.mxu0 0
    %68 = vmatpush1.bf16.msra.mxu0 0
    %69 = vmatprep.subr.bf16.mxu0 0
    %70 = vmatpush1.bf16.msra.mxu0 0
    %71 = vmatprep.subr.bf16.mxu0 0
    %72 = vmatpush1.bf16.msra.mxu0 0
    %73 = vmatprep.subr.bf16.mxu0 0
    %74 = vmatpush1.bf16.msra.mxu0 0
    %75 = vmatprep.subr.bf16.mxu0 0
    %76 = vmatpush1.bf16.msra.mxu0 0
    %77 = vmatprep.subr.bf16.mxu0 0
    %78 = vmatpush1.bf16.msra.mxu0 0
    %79 = vmatprep.subr.bf16.mxu0 0
    %80 = vmatpush1.bf16.msra.mxu0 0
    %81 = vmatprep.subr.bf16.mxu0 0
    %82 = vmatpush1.bf16.msra.mxu0 0
    %83 = vmatprep.subr.bf16.mxu0 0
    %84 = vmatpush1.bf16.msra.mxu0 0
    %85 = vmatprep.subr.bf16.mxu0 0
    %86 = vmatpush1.bf16.msra.mxu0 0
    %87 = vmatprep.subr.bf16.mxu0 0
    %88 = vmatpush1.bf16.msra.mxu0 0
    %89 = vmatprep.subr.bf16.mxu0 0
    %90 = vmatpush1.bf16.msra.mxu0 0
    %91 = vmatprep.subr.bf16.mxu0 0
    %92 = vmatpush1.bf16.msra.mxu0 0
    %93 = vmatprep.subr.bf16.mxu0 0
    %94 = vmatpush1.bf16.msra.mxu0 0
    %95 = vmatprep.mubr.bf16.mxu0 0
    %96 = vmatmul.mubr.bf16.gmra.mrb[0].mxu0 %v61
    %v97 = vpop.f32.mrb[0].mxu0
    %v98 = vadd.f32 %v40, %v97
    %v99 = vpop.f32.mrb[0].mxu0
    %v100 = vpop.f32.mrb[0].mxu0
    %v101 = vadd.f32 %v40, %v100
    %v102 = vpop.f32.mrb[0].mxu0
    %103 = vdwg.mxu0
    %v104 = vmax.f32 %v98, 0.0
    %v105 = vmax.f32 %v101, 0.0
    %v106 = vpack.c.bf16 %v105, %v104
    %v107 = vld [vmem:[%s3] sm:$0xf]
    %v108 = vld [vmem:[%s3 + $0x4] sm:$0xf]
    %v109 = vld [vmem:[%s3 + $0x8] sm:$0xf]
    %v110 = vld [vmem:[%s3 + $0xc] sm:$0xf]
    %v111 = vld [vmem:[%s3 + $0x10] sm:$0xf]
    %v112 = vld [vmem:[%s3 + $0x14] sm:$0xf]
    %v113 = vld [vmem:[%s3 + $0x18] sm:$0xf]
    %v114 = vld [vmem:[%s3 + $0x1c] sm:$0xf]
    %v115 = vld [vmem:[%s3 + $0x20] sm:$0xf]
    %v116 = vld [vmem:[%s3 + $0x24] sm:$0xf]
    %v117 = vld [vmem:[%s3 + $0x28] sm:$0xf]
    %v118 = vld [vmem:[%s3 + $0x2c] sm:$0xf]
    %v119 = vld [vmem:[%s3 + $0x30] sm:$0xf]
    %v120 = vld [vmem:[%s3 + $0x34] sm:$0xf]
    %v121 = vld [vmem:[%s3 + $0x38] sm:$0xf]
    %v122 = vld [vmem:[%s3 + $0x3c] sm:$0xf]
    %v123 = vld [vmem:[%s4] sm:$0x1]
    %v125 = vlaneseq
    %v126 = vshrl.u32 %v125, 7
    %v127 = vsub.s32 0, %v126
    %v128 = vrot.slane %v123, %v127
    %v146 = vunpack.c.l.b16 %v107
    %v147 = vunpack.c.l.b16 %v108
    %v148 = vunpack.c.l.b16 %v109
    %v149 = vunpack.c.l.b16 %v110
    %v150 = vunpack.c.l.b16 %v111
    %v151 = vunpack.c.l.b16 %v112
    %v152 = vunpack.c.l.b16 %v113
    %v153 = vunpack.c.l.b16 %v114
    %v154 = vunpack.c.l.b16 %v115
    %v155 = vunpack.c.l.b16 %v116
    %v156 = vunpack.c.l.b16 %v117
    %v157 = vunpack.c.l.b16 %v118
    %v158 = vunpack.c.l.b16 %v119
    %v159 = vunpack.c.l.b16 %v120
    %v160 = vunpack.c.l.b16 %v121
    %v161 = vunpack.c.l.b16 %v122
    %v162 = vpack.c.b16 %v147, %v146
    %v163 = vpack.c.b16 %v149, %v148
    %v164 = vpack.c.b16 %v151, %v150
    %v165 = vpack.c.b16 %v153, %v152
    %v166 = vpack.c.b16 %v155, %v154
    %v167 = vpack.c.b16 %v157, %v156
    %v168 = vpack.c.b16 %v159, %v158
    %v169 = vpack.c.b16 %v161, %v160
    %178 = vmatprep.subr.bf16.mxu0 0
    %179 = vmatpush1.bf16.msra.mxu0 %v162
    %180 = vmatprep.subr.bf16.mxu0 0
    %181 = vmatpush1.bf16.msra.mxu0 %v163
    %182 = vmatprep.subr.bf16.mxu0 0
    %183 = vmatpush1.bf16.msra.mxu0 %v164
    %184 = vmatprep.subr.bf16.mxu0 0
    %185 = vmatpush1.bf16.msra.mxu0 %v165
    %186 = vmatprep.subr.bf16.mxu0 0
    %187 = vmatpush1.bf16.msra.mxu0 %v166
    %188 = vmatprep.subr.bf16.mxu0 0
    %189 = vmatpush1.bf16.msra.mxu0 %v167
    %190 = vmatprep.subr.bf16.mxu0 0
    %191 = vmatpush1.bf16.msra.mxu0 %v168
    %192 = vmatprep.subr.bf16.mxu0 0
    %193 = vmatpush1.bf16.msra.mxu0 %v169
    %194 = vmatprep.subr.bf16.mxu0 0
    %195 = vmatpush1.bf16.msra.mxu0 0
    %196 = vmatprep.subr.bf16.mxu0 0
    %197 = vmatpush1.bf16.msra.mxu0 0
    %198 = vmatprep.subr.bf16.mxu0 0
    %199 = vmatpush1.bf16.msra.mxu0 0
    %200 = vmatprep.subr.bf16.mxu0 0
    %201 = vmatpush1.bf16.msra.mxu0 0
    %202 = vmatprep.subr.bf16.mxu0 0
    %203 = vmatpush1.bf16.msra.mxu0 0
    %204 = vmatprep.subr.bf16.mxu0 0
    %205 = vmatpush1.bf16.msra.mxu0 0
    %206 = vmatprep.subr.bf16.mxu0 0
    %207 = vmatpush1.bf16.msra.mxu0 0
    %208 = vmatprep.subr.bf16.mxu0 0
    %209 = vmatpush1.bf16.msra.mxu0 0
    %210 = vmatprep.mubr.bf16.mxu0 0
    %211 = vmatmul.mubr.bf16.gmra.mrb[0].mxu0 %v106
    %v212 = vpop.f32.mrb[0].mxu0
    %v213 = vadd.f32 %v128, %v212
    %v214 = vpop.f32.mrb[0].mxu0
    %v215 = vpop.f32.mrb[0].mxu0
    %v216 = vadd.f32 %v128, %v215
    %v217 = vpop.f32.mrb[0].mxu0
    %218 = vdwg.mxu0
    %vm219 = vcmask 130048
    %v220 = vsel %vm219, %v213, -inf
    %221 = vmax.xlane.f32.xlu0 %v220
    %v222 = vpop.xlane.xlu0 %221
    %vm223 = vcmask 123904
    %v224 = vsel %vm223, %v216, -inf
    %225 = vmax.xlane.f32.xlu0 %v224
    %v226 = vpop.xlane.xlu0 %225
    %v227 = vsub.f32 %v213, %v222
    %v228 = vsub.f32 %v216, %v226
    %v229 = vmul.f32 %v227, 1.442695
    %v230 = vpow.pop %v229
    %v231 = vmul.f32 %v228, 1.442695
    %v232 = vpow.pop %v231
    %v233 = vsel %vm219, %v230, 0.0
    %234 = vadd.xlane.f32.xlu0 %v233
    %v235 = vpop.xlane.xlu0 %234
    %v236 = vsel %vm223, %v232, 0.0
    %237 = vadd.xlane.f32.xlu0 %v236
    %v238 = vpop.xlane.xlu0 %237
    %v239 = vrcp.pop %v235
    %v240 = vmul.f32 %v230, %v239
    %v241 = vrcp.pop %v238
    %v242 = vmul.f32 %v232, %v241
    %v243 = vpack.c.bf16 %v242, %v240
    %v244 = vld [vmem:[%s5] sm:$0xf]
    %v245 = vld [vmem:[%s5 + $0x4] sm:$0xf]
    %v248 = vunpack.c.l.b16 %v244
    %v249 = vunpack.c.l.b16 %v245
    %v250 = vpack.c.b16 %v249, %v248
    %v253 = vsel %vm219, %v243, 0
    %255 = vmatprep.subr.bf16.mxu0 0
    %256 = vmatpush1.bf16.msra.mxu0 %v250
    %257 = vmatprep.subr.bf16.mxu0 0
    %258 = vmatpush1.bf16.msra.mxu0 0
    %259 = vmatprep.subr.bf16.mxu0 0
    %260 = vmatpush1.bf16.msra.mxu0 0
    %261 = vmatprep.subr.bf16.mxu0 0
    %262 = vmatpush1.bf16.msra.mxu0 0
    %263 = vmatprep.subr.bf16.mxu0 0
    %264 = vmatpush1.bf16.msra.mxu0 0
    %265 = vmatprep.subr.bf16.mxu0 0
    %266 = vmatpush1.bf16.msra.mxu0 0
    %267 = vmatprep.subr.bf16.mxu0 0
    %268 = vmatpush1.bf16.msra.mxu0 0
    %269 = vmatprep.subr.bf16.mxu0 0
    %270 = vmatpush1.bf16.msra.mxu0 0
    %271 = vmatprep.subr.bf16.mxu0 0
    %272 = vmatpush1.bf16.msra.mxu0 0
    %273 = vmatprep.subr.bf16.mxu0 0
    %274 = vmatpush1.bf16.msra.mxu0 0
    %275 = vmatprep.subr.bf16.mxu0 0
    %276 = vmatpush1.bf16.msra.mxu0 0
    %277 = vmatprep.subr.bf16.mxu0 0
    %278 = vmatpush1.bf16.msra.mxu0 0
    %279 = vmatprep.subr.bf16.mxu0 0
    %280 = vmatpush1.bf16.msra.mxu0 0
    %281 = vmatprep.subr.bf16.mxu0 0
    %282 = vmatpush1.bf16.msra.mxu0 0
    %283 = vmatprep.subr.bf16.mxu0 0
    %284 = vmatpush1.bf16.msra.mxu0 0
    %285 = vmatprep.subr.bf16.mxu0 0
    %286 = vmatpush1.bf16.msra.mxu0 0
    %287 = vmatprep.mubr.bf16.mxu0 0
    %288 = vmatmul.mubr.bf16.gmra.mrb[0].mxu0 %v253
    %v289 = vpop.f32.mrb[0].mxu0
    %v290 = vadd.f32 0.0, %v289
    %v291 = vpop.f32.mrb[0].mxu0
    %v292 = vpop.f32.mrb[0].mxu0
    %v293 = vadd.f32 0.0, %v292
    %v294 = vpop.f32.mrb[0].mxu0
    %295 = vdwg.mxu0
    %296 = vst.msk [vmem:[#allocation2] sm:$0xff] %vm219, %v213
    %297 = vst.msk [vmem:[#allocation2 + $0x8] sm:$0x3] %vm223, %v216
    %298 = vst.msk [vmem:[#allocation4] sm:$0xff] %vm219, %v240
    %299 = vst.msk [vmem:[#allocation4 + $0x8] sm:$0x3] %vm223, %v242
    %300 = vst.msk [vmem:[#allocation6] sm:$0xff] %vm59, %v290
    %vm301 = vcmask 254976
    %302 = vst.msk [vmem:[#allocation6 + $0x8] sm:$0x3] %vm301, %v293
    // Predicated region
    $region26: #{tpu_custom_call.1} parent=1 // pred_check
      _
    $region27: #{tpu_custom_call.1} parent=1 // pred_check_branch
      %304 = sbr.rel (0) target = $region29
    $region28: #{tpu_custom_call.1} parent=1 // pred_region
      %s306 = ssub.s32 256, 256
      %307 = vsyncadd [#allocation3], %s306
      %s308 = sshll.u32 [#allocation2], 4
      %s309 = int_to_ptr.vmem [resolvable:$true] %s308
      %314 = dma.vmem_to_hbm [thread:$0]  %s309, 256, %s6, [#allocation3], 128, 128, 8
    $region29: #{tpu_custom_call.1} parent=1 // pred_fallthru
      _
    // Predicated region
    $region30: #{tpu_custom_call.1} parent=1 // pred_check
      _
    $region31: #{tpu_custom_call.1} parent=1 // pred_check_branch
      %316 = sbr.rel (0) target = $region33
    $region32: #{tpu_custom_call.1} parent=1 // pred_region
      %s318 = ssub.s32 256, 256
      %319 = vsyncadd [#allocation5], %s318
      %s320 = sshll.u32 [#allocation4], 4
      %s321 = int_to_ptr.vmem [resolvable:$true] %s320
      %326 = dma.vmem_to_hbm [thread:$0]  %s321, 256, %s7, [#allocation5], 128, 128, 8
    $region33: #{tpu_custom_call.1} parent=1 // pred_fallthru
      _
    // Predicated region
    $region34: #{tpu_custom_call.1} parent=1 // pred_check
      _
    $region35: #{tpu_custom_call.1} parent=1 // pred_check_branch
      %328 = sbr.rel (0) target = $region37
    $region36: #{tpu_custom_call.1} parent=1 // pred_region
      %s330 = ssub.s32 256, 256
      %331 = vsyncadd [#allocation5], %s330
      %s332 = sshll.u32 [#allocation6], 4
      %s333 = int_to_ptr.vmem [resolvable:$true] %s332
      %338 = dma.vmem_to_hbm [thread:$0]  %s333, 256, %s8, [#allocation5], 128, 128, 8
    $region37: #{tpu_custom_call.1} parent=1 // pred_fallthru
      _
    // Predicated region
    $region38: #{tpu_custom_call.1} parent=1 // pred_check
      _
    $region39: #{tpu_custom_call.1} parent=1 // pred_check_branch
      %340 = sbr.rel (0) target = $region41
    $region40: #{tpu_custom_call.1} parent=1 // pred_region
      %341 = dma.done [#allocation3], 256
    $region41: #{tpu_custom_call.1} parent=1 // pred_fallthru
      _
    // Predicated region
    $region42: #{tpu_custom_call.1} parent=1 // pred_check
      _
    $region43: #{tpu_custom_call.1} parent=1 // pred_check_branch
      %343 = sbr.rel (0) target = $region45
    $region44: #{tpu_custom_call.1} parent=1 // pred_region
      %344 = dma.done [#allocation5], 256
    $region45: #{tpu_custom_call.1} parent=1 // pred_fallthru
      _
    // Predicated region
    $region46: #{tpu_custom_call.1} parent=1 // pred_check
      _
    $region47: #{tpu_custom_call.1} parent=1 // pred_check_branch
      %346 = sbr.rel (0) target = $region49
    $region48: #{tpu_custom_call.1} parent=1 // pred_region
      %347 = dma.done [#allocation5], 256
    $region49: #{tpu_custom_call.1} parent=1 // pred_fallthru
      _
    %348 = vsyncpa [#allocation3], 1
    %349 = vsyncpa [#allocation5], 1

</llo_original>
